<compile_context>
chip_gen: v7x
topology: tpu7x:2x2x1
jax: 0.10.0
libtpu: 0.0.40
codegen_flags: <defaults>
</compile_context>

<pallas_src>
import functools

import numpy as np
import jax
import jax.numpy as jnp
from jax import lax
from jax.experimental import pallas as pl
from jax.experimental.pallas import tpu as pltpu

_HALO_SENTINEL = -1.0    # any negative value: never ==0, never >0
_NUM_PASSES = 2          # the module always runs two dilation passes


def _round_up(x, m):
    return ((x + m - 1) // m) * m


# ----------------------------- Pallas kernel -----------------------------

def _hardmap_kernel(x_ref, out_ref, slab_ref, *, k, nb_block, H, W, Hb):
    """Two masked 3x3 max-dilation passes on nb_block samples.

    x_ref / out_ref: (nb_block, H, W) raw mask block.
    slab_ref:        (nb_block*Hb, Wp) f32 VMEM scratch; samples stacked along the
                     sublane axis, each in a lane-dense window surrounded by -1
                     sentinels (pad/crop fused here instead of in XLA).
    """
    # Sentinel-fill the whole slab, then overwrite the data windows.  Re-filling
    # every step keeps the kernel stateless across grid iterations (safe under
    # megacore "parallel" sharding); the extra VMEM stores are negligible.
    slab_ref[...] = jnp.full(slab_ref.shape, _HALO_SENTINEL, slab_ref.dtype)
    for s in range(nb_block):
        slab_ref[s * Hb:s * Hb + H, 0:W] = x_ref[s]

    mp = slab_ref[...]
    R, Wp = mp.shape

    def dmax3x3(a):
        # Separable 3x3 max; rolls go to the XLU slot (no VALU cost).  The
        # circular wrap only ever moves sentinel rows/cols between samples.
        # TODO(synk): verify with pl.lower_as_mlir that shift=R-1 / Wp-1
        # canonicalises to a single -1-element rotate on v6e/v7x.
        d = jnp.maximum(a, jnp.maximum(pltpu.roll(a, shift=1, axis=0),
                                       pltpu.roll(a, shift=R - 1, axis=0)))
        d = jnp.maximum(d, jnp.maximum(pltpu.roll(d, shift=1, axis=1),
                                       pltpu.roll(d, shift=Wp - 1, axis=1)))
        return d

    is_zero = mp == 0.0                      # sentinels (-1) are never "zero"
    for it in range(_NUM_PASSES):
        coef = 1.0 / float(k) ** (it + 1)
        # zero pixels with a positive value somewhere in their 3x3 neighbourhood
        # (max-dilating mp directly works: halo is -1, data is >= 0)
        boundary = jnp.where(is_zero & (dmax3x3(mp) > 0.0), 1.0, 0.0)
        # every zero pixel inside the 3x3 neighbourhood of a boundary zero
        update = is_zero & (dmax3x3(boundary) > 0.0)
        mp = jnp.where(update, coef, mp)
        if it + 1 < _NUM_PASSES:
            # updated pixels became positive; everything else keeps its zeroness
            is_zero = jnp.logical_and(is_zero, jnp.logical_not(update))

    # Crop each sample's window back into the raw (H, W) output block.
    for s in range(nb_block):
        out_ref[s] = mp[s * Hb:s * Hb + H, 0:W]


# ----------------------------- wrapper -----------------------------

@functools.partial(jax.jit, static_argnames=("nb", "k"))
def _hardmap_impl(mask, *, nb, k):
    orig_dtype = mask.dtype
    N, H, W = mask.shape
    x = mask[:nb].astype(jnp.float32)

    Hb = _round_up(H + 2, 8)       # sublane-aligned sample slot, >= 2 sentinel rows
    Wp = _round_up(W + 2, 128)     # lane-aligned slab width,     >= 2 sentinel cols

    # Samples per grid step from a VMEM budget: scratch slab + ~6 live full-slab
    # temporaries (mp / dilates / boundary / update) + double-buffered raw in/out
    # blocks.  24 MiB target leaves generous headroom on v7x's 64 MiB VMEM.
    slab_bytes = Hb * Wp * 4
    per_sample = 7 * slab_bytes + 4 * H * W * 4
    nb_block = max(1, min(nb, (24 * 1024 * 1024) // per_sample, 16))
    if nb > 1 and pl.cdiv(nb, nb_block) < 2:
        nb_block = pl.cdiv(nb, 2)  # >= 2 grid steps so both v7x cores get work

    out = pl.pallas_call(
        functools.partial(_hardmap_kernel, k=k, nb_block=nb_block,
                          H=H, W=W, Hb=Hb),
        out_shape=jax.ShapeDtypeStruct((nb, H, W), jnp.float32),
        grid=(pl.cdiv(nb, nb_block),),
        in_specs=[pl.BlockSpec((nb_block, H, W), lambda i: (i, 0, 0))],
        out_specs=pl.BlockSpec((nb_block, H, W), lambda i: (i, 0, 0)),
        scratch_shapes=[pltpu.VMEM((nb_block * Hb, Wp), jnp.float32)],
        compiler_params=pltpu.CompilerParams(
            dimension_semantics=("parallel",),       # batch shards on v7x megacore
            vmem_limit_bytes=48 * 1024 * 1024),      # v5e default is only 16 MiB
    )(x)

    updated = out.astype(orig_dtype)
    if nb < N:
        return lax.dynamic_update_slice(mask, updated, (0, 0, 0))
    return updated


def hardmap_mask_update(batch_size, mask, *, k):
    """Pallas forward of Hardmap_Mask_Update.forward(batch_size, mask).

    mask: (N, H, W) array with non-negative values (PD-GAN masks are {0,1} plus
    previously assigned 1/k**p coefficients).  Returns the updated mask.
    """
    # TODO(synk): masks with negative entries are out of scope (the torch code's
    # `sum > 0` test and this max-dilation only agree for non-negative masks).
    mask = jnp.asarray(mask)
    nb = max(0, min(int(batch_size), mask.shape[0]))
    if nb == 0:
        return mask
    return _hardmap_impl(mask, nb=nb, k=float(k))


# ----------------------------- references (verification) -----------------------------

def _loopy_reference(batch_size, mask, k):
    """Direct transliteration of the PyTorch module's (docstring-intended) loops."""
    out = np.array(mask, dtype=np.float64, copy=True)
    n, H, W = out.shape
    for imask in range(min(int(batch_size), n)):
        for idlt in range(2):
            zr, zc = np.where(out[imask] == 0)
            if zr.size == 0:
                break
            m_pad = np.zeros((H + 2, W + 2), np.float64)
            m_pad[1:-1, 1:-1] = out[imask]
            coords = set()
            for idx, idy in zip(zr.tolist(), zc.tolist()):
                nb = m_pad[idx:idx + 3, idy:idy + 3]
                if nb.sum() > 0:                       # boundary zero
                    for j in range(3):
                        for kk in range(3):
                            if nb[j, kk] == 0:
                                coords.add((idx + j, idy + kk))
            for a, b in coords:
                m_pad[a, b] = 1.0 / k ** (idlt + 1)
            out[imask] = m_pad[1:-1, 1:-1]
    return out


# Ground-truth example straight from the module's docstring (k = 2).
_M_EXAMPLE = np.array([[1, 1, 1, 1, 1],
                       [1, 0, 0, 0, 0],
                       [1, 0, 0, 0, 0],
                       [1, 0, 0, 0, 0],
                       [0, 0, 0, 0, 0]], np.float32)
_M_EXPECTED = np.array([[1.00, 1.00, 1.00, 1.00, 1.00],
                        [1.00, 0.50, 0.50, 0.50, 0.50],
                        [1.00, 0.50, 0.50, 0.50, 0.50],
                        [1.00, 0.50, 0.50, 0.25, 0.25],
                        [0.50, 0.50, 0.50, 0.25, 0.25]], np.float32)


# ----------------------------- main -----------------------------

if __name__ == "__main__":
    N, H, W, K = 2, 16, 16, 2
    key = jax.random.PRNGKey(0)
    _, k2 = jax.random.split(key)

    # sample 0: rectangular inpainting hole; sample 1: random holes
    mask = jnp.ones((N, H, W), jnp.float32)
    mask = mask.at[0, 4:12, 5:13].set(0.0)
    rnd = (jax.random.uniform(k2, (H, W)) > 0.35).astype(jnp.float32)
    mask = mask.at[1].set(rnd)

    out = jax.block_until_ready(hardmap_mask_update(N, mask, k=K))
    assert out.shape == (N, H, W), out.shape

    # 1) docstring example (ground truth from the spec)
    ex_out = jax.block_until_ready(
        hardmap_mask_update(1, jnp.asarray(_M_EXAMPLE)[None], k=2))[0]
    np.testing.assert_allclose(np.asarray(ex_out), _M_EXPECTED, rtol=0, atol=1e-6)

    # 2) loop-for-loop transliteration of the PyTorch forward on the demo batch
    ref = _loopy_reference(N, np.asarray(mask), K)
    np.testing.assert_allclose(np.asarray(out), ref, rtol=0, atol=1e-6)

    # 3) batch_size < mask.shape[0]: untouched trailing samples pass through
    out_partial = jax.block_until_ready(hardmap_mask_update(1, mask, k=K))
    ref_partial = _loopy_reference(1, np.asarray(mask), K)
    np.testing.assert_allclose(np.asarray(out_partial), ref_partial, rtol=0, atol=1e-6)

    print("KERNEL_OK")
</pallas_src>

<mosaic_0001>
module attributes {stable_mosaic.version = 11 : i64} {
  func.func @_hardmap_kernel(%arg0: i32, %arg1: memref<1x16x16xf32, #tpu.memory_space<vmem>>, %arg2: memref<1x16x16xf32, #tpu.memory_space<vmem>>, %arg3: memref<24x128xf32, #tpu.memory_space<vmem>>) attributes {dimension_semantics = [#tpu.dimension_semantics<parallel>], iteration_bounds = array<i64: 2>, scalar_prefetch = 0 : i64, scratch_operands = 1 : i64, tpu.core_type = #tpu.core_type<tc>, window_params = [{transform_indices = @transform_0, window_bounds = array<i64: 1, 16, 16>}, {transform_indices = @transform_1, window_bounds = array<i64: 1, 16, 16>}]} {
    %cst = arith.constant -1.000000e+00 : f32
    %0 = vector.broadcast %cst : f32 to vector<24x128xf32>
    %c0 = arith.constant 0 : index
    %c0_0 = arith.constant 0 : index
    %1 = vector.load %arg3[%c0, %c0_0] : memref<24x128xf32, #tpu.memory_space<vmem>>, vector<24x128xf32>
    tpu.vector_store %arg3[%c0, %c0_0], %0 {strides = array<i32>} : memref<24x128xf32, #tpu.memory_space<vmem>>, vector<24x128xf32>,
    %c0_1 = arith.constant 0 : index
    %c0_2 = arith.constant 0 : index
    %c0_3 = arith.constant 0 : index
    %2 = vector.load %arg1[%c0_1, %c0_2, %c0_3] : memref<1x16x16xf32, #tpu.memory_space<vmem>>, vector<1x16x16xf32>
    %3 = vector.shape_cast %2 : vector<1x16x16xf32> to vector<16x16xf32>
    %c0_4 = arith.constant 0 : index
    %c0_5 = arith.constant 0 : index
    %4 = vector.load %arg3[%c0_4, %c0_5] : memref<24x128xf32, #tpu.memory_space<vmem>>, vector<16x16xf32>
    tpu.vector_store %arg3[%c0_4, %c0_5], %3 {strides = array<i32>} : memref<24x128xf32, #tpu.memory_space<vmem>>, vector<16x16xf32>,
    %c0_6 = arith.constant 0 : index
    %c0_7 = arith.constant 0 : index
    %5 = vector.load %arg3[%c0_6, %c0_7] : memref<24x128xf32, #tpu.memory_space<vmem>>, vector<24x128xf32>
    %cst_8 = arith.constant 0.000000e+00 : f32
    %6 = vector.broadcast %cst_8 : f32 to vector<24x128xf32>
    %7 = arith.cmpf oeq, %5, %6 : vector<24x128xf32>
    %c1_i32 = arith.constant 1 : i32
    %8 = tpu.dynamic_rotate %5 by %c1_i32 dim 0 : vector<24x128xf32>, i32 -> vector<24x128xf32>
    %c23_i32 = arith.constant 23 : i32
    %9 = tpu.dynamic_rotate %5 by %c23_i32 dim 0 : vector<24x128xf32>, i32 -> vector<24x128xf32>
    %10 = arith.maximumf %8, %9 : vector<24x128xf32>
    %11 = arith.maximumf %5, %10 : vector<24x128xf32>
    %c1_i32_9 = arith.constant 1 : i32
    %12 = tpu.dynamic_rotate %11 by %c1_i32_9 dim 1 : vector<24x128xf32>, i32 -> vector<24x128xf32>
    %c127_i32 = arith.constant 127 : i32
    %13 = tpu.dynamic_rotate %11 by %c127_i32 dim 1 : vector<24x128xf32>, i32 -> vector<24x128xf32>
    %14 = arith.maximumf %12, %13 : vector<24x128xf32>
    %15 = arith.maximumf %11, %14 : vector<24x128xf32>
    %cst_10 = arith.constant 0.000000e+00 : f32
    %16 = vector.broadcast %cst_10 : f32 to vector<24x128xf32>
    %17 = arith.cmpf ogt, %15, %16 : vector<24x128xf32>
    %18 = arith.andi %7, %17 : vector<24x128xi1>
    %cst_11 = arith.constant 1.000000e+00 : f32
    %cst_12 = arith.constant 0.000000e+00 : f32
    %19 = vector.broadcast %cst_11 : f32 to vector<24x128xf32>
    %20 = vector.broadcast %cst_12 : f32 to vector<24x128xf32>
    %21 = arith.select %18, %19, %20 : vector<24x128xi1>, vector<24x128xf32>
    %c1_i32_13 = arith.constant 1 : i32
    %22 = tpu.dynamic_rotate %21 by %c1_i32_13 dim 0 : vector<24x128xf32>, i32 -> vector<24x128xf32>
    %c23_i32_14 = arith.constant 23 : i32
    %23 = tpu.dynamic_rotate %21 by %c23_i32_14 dim 0 : vector<24x128xf32>, i32 -> vector<24x128xf32>
    %24 = arith.maximumf %22, %23 : vector<24x128xf32>
    %25 = arith.maximumf %21, %24 : vector<24x128xf32>
    %c1_i32_15 = arith.constant 1 : i32
    %26 = tpu.dynamic_rotate %25 by %c1_i32_15 dim 1 : vector<24x128xf32>, i32 -> vector<24x128xf32>
    %c127_i32_16 = arith.constant 127 : i32
    %27 = tpu.dynamic_rotate %25 by %c127_i32_16 dim 1 : vector<24x128xf32>, i32 -> vector<24x128xf32>
    %28 = arith.maximumf %26, %27 : vector<24x128xf32>
    %29 = arith.maximumf %25, %28 : vector<24x128xf32>
    %cst_17 = arith.constant 0.000000e+00 : f32
    %30 = vector.broadcast %cst_17 : f32 to vector<24x128xf32>
    %31 = arith.cmpf ogt, %29, %30 : vector<24x128xf32>
    %32 = arith.andi %7, %31 : vector<24x128xi1>
    %cst_18 = arith.constant 5.000000e-01 : f32
    %33 = vector.broadcast %cst_18 : f32 to vector<24x128xf32>
    %34 = arith.select %32, %33, %5 : vector<24x128xi1>, vector<24x128xf32>
    %cst_19 = arith.constant dense<true> : vector<24x128xi1>
    %35 = arith.xori %32, %cst_19 : vector<24x128xi1>
    %36 = arith.andi %7, %35 : vector<24x128xi1>
    %c1_i32_20 = arith.constant 1 : i32
    %37 = tpu.dynamic_rotate %34 by %c1_i32_20 dim 0 : vector<24x128xf32>, i32 -> vector<24x128xf32>
    %c23_i32_21 = arith.constant 23 : i32
    %38 = tpu.dynamic_rotate %34 by %c23_i32_21 dim 0 : vector<24x128xf32>, i32 -> vector<24x128xf32>
    %39 = arith.maximumf %37, %38 : vector<24x128xf32>
    %40 = arith.maximumf %34, %39 : vector<24x128xf32>
    %c1_i32_22 = arith.constant 1 : i32
    %41 = tpu.dynamic_rotate %40 by %c1_i32_22 dim 1 : vector<24x128xf32>, i32 -> vector<24x128xf32>
    %c127_i32_23 = arith.constant 127 : i32
    %42 = tpu.dynamic_rotate %40 by %c127_i32_23 dim 1 : vector<24x128xf32>, i32 -> vector<24x128xf32>
    %43 = arith.maximumf %41, %42 : vector<24x128xf32>
    %44 = arith.maximumf %40, %43 : vector<24x128xf32>
    %cst_24 = arith.constant 0.000000e+00 : f32
    %45 = vector.broadcast %cst_24 : f32 to vector<24x128xf32>
    %46 = arith.cmpf ogt, %44, %45 : vector<24x128xf32>
    %47 = arith.andi %36, %46 : vector<24x128xi1>
    %cst_25 = arith.constant 1.000000e+00 : f32
    %cst_26 = arith.constant 0.000000e+00 : f32
    %48 = vector.broadcast %cst_25 : f32 to vector<24x128xf32>
    %49 = vector.broadcast %cst_26 : f32 to vector<24x128xf32>
    %50 = arith.select %47, %48, %49 : vector<24x128xi1>, vector<24x128xf32>
    %c1_i32_27 = arith.constant 1 : i32
    %51 = tpu.dynamic_rotate %50 by %c1_i32_27 dim 0 : vector<24x128xf32>, i32 -> vector<24x128xf32>
    %c23_i32_28 = arith.constant 23 : i32
    %52 = tpu.dynamic_rotate %50 by %c23_i32_28 dim 0 : vector<24x128xf32>, i32 -> vector<24x128xf32>
    %53 = arith.maximumf %51, %52 : vector<24x128xf32>
    %54 = arith.maximumf %50, %53 : vector<24x128xf32>
    %c1_i32_29 = arith.constant 1 : i32
    %55 = tpu.dynamic_rotate %54 by %c1_i32_29 dim 1 : vector<24x128xf32>, i32 -> vector<24x128xf32>
    %c127_i32_30 = arith.constant 127 : i32
    %56 = tpu.dynamic_rotate %54 by %c127_i32_30 dim 1 : vector<24x128xf32>, i32 -> vector<24x128xf32>
    %57 = arith.maximumf %55, %56 : vector<24x128xf32>
    %58 = arith.maximumf %54, %57 : vector<24x128xf32>
    %cst_31 = arith.constant 0.000000e+00 : f32
    %59 = vector.broadcast %cst_31 : f32 to vector<24x128xf32>
    %60 = arith.cmpf ogt, %58, %59 : vector<24x128xf32>
    %61 = arith.andi %36, %60 : vector<24x128xi1>
    %cst_32 = arith.constant 2.500000e-01 : f32
    %62 = vector.broadcast %cst_32 : f32 to vector<24x128xf32>
    %63 = arith.select %61, %62, %34 : vector<24x128xi1>, vector<24x128xf32>
    %64 = vector.extract_strided_slice %63 {offsets = [0, 0], sizes = [16, 16], strides = [1, 1]} : vector<24x128xf32> to vector<16x16xf32>
    %c0_33 = arith.constant 0 : index
    %c0_34 = arith.constant 0 : index
    %c0_35 = arith.constant 0 : index
    %65 = vector.load %arg2[%c0_33, %c0_34, %c0_35] : memref<1x16x16xf32, #tpu.memory_space<vmem>>, vector<1x16x16xf32>
    %66 = vector.shape_cast %65 : vector<1x16x16xf32> to vector<16x16xf32>
    %67 = vector.shape_cast %64 : vector<16x16xf32> to vector<1x16x16xf32>
    tpu.vector_store %arg2[%c0_33, %c0_34, %c0_35], %67 {strides = array<i32>} : memref<1x16x16xf32, #tpu.memory_space<vmem>>, vector<1x16x16xf32>,
    return
  }
  func.func @transform_0(%arg0: i32) -> (i32, i32, i32) {
    %c0_i32 = arith.constant 0 : i32
    %c0_i32_0 = arith.constant 0 : i32
    %c0_i32_1 = arith.constant 0 : i32
    return %arg0, %c0_i32, %c0_i32_0 : i32, i32, i32
  }
  func.func @transform_1(%arg0: i32) -> (i32, i32, i32) {
    %c0_i32 = arith.constant 0 : i32
    %c0_i32_0 = arith.constant 0 : i32
    %c0_i32_1 = arith.constant 0 : i32
    return %arg0, %c0_i32, %c0_i32_0 : i32, i32, i32
  }
}

</mosaic_0001>

<llo_original>
// kernel: _hardmap_impl.1
$region0: #{_hardmap_impl.1}
  #allocation0 [shape = 'u32[]', space=smem, size = 0x4, offset = 0x4, fixed_abs, tag = 'smem constant byte address 0x4 - core index']
  #allocation1 [shape = 'u32[144,128]{1,0:T(1,128)}', space=vmem, size = 0x12000, scoped, tag = 'internal scratch']
  #allocation2 [shape = 'f32[24,128]{1,0:T(8,128)}', space=vmem, size = 0x3000, scoped, tag = 'scratch operand']
  %s0 = inlined_call_operand.hbm [shape: f32[2,16,16], index: 0, kind: input, shape index: {}]
  %s1 = inlined_call_operand.hbm [shape: f32[2,16,16], index: 1, kind: output, shape index: {}]
  %s2 = sld [smem:[#allocation0]]
  $region41: #{_hardmap_impl.1} parent=0
    _
  %s4 = ssub.s32 1, %s2
  %s5 = scalar_select 0, %s4, %s2
  $region1: #{_hardmap_impl.1} parent=0
    #allocation3 [shape = 'u8[16384]{0}', space=vmem, size = 0x4000, scoped, tag = 'input window, operand 0']
    #allocation4 [shape = 's32[2]{0}', space=sflag, size = 0x8, scoped, tag = 'scoped memory for _hardmap_impl.1']
    #allocation5 [shape = 's32[2]{0}', space=sflag, size = 0x8, scoped, tag = 'scoped memory for _hardmap_impl.1']
    #allocation6 [shape = 'u8[16384]{0}', space=vmem, size = 0x4000, scoped, tag = 'output window, operand 0']
    %6 = vsyncpa [#allocation4], 0
    %s7 = scalar_lea.sflag [#allocation4], 1
    %8 = vsyncpa %s7, 0
    %9 = vsyncpa [#allocation5], 0
    %s10 = scalar_lea.sflag [#allocation5], 1
    %11 = vsyncpa %s10, 0
    loop: start=0, step=1, limit=4
    $region2: #{_hardmap_impl.1} parent=1 // loop_pre_header
      _
    $region3: #{_hardmap_impl.1} parent=1 // loop_header
      %s13 = sphi 0, %s17
      %p14 = scmp.ge.s32.totalorder %s13, 4
      %s23 = sphi 0, %s25
      %s26 = sphi 0, %s23
      %s27 = sphi 0, %s26
      %s43 = sphi 0, %s27
      %s49 = sphi 0, %s51
      %s52 = sphi 0, %s49
      %s53 = sphi 0, %s52
      %s69 = sphi 0, %s53
    $region4: #{_hardmap_impl.1} parent=1 // loop_header_branch
      %16 = sbr.rel (%p14) target = $region8
    $region5: #{_hardmap_impl.1} parent=1 // loop_body
      %s18 = ssub.s32 %s13, 1
      %s19 = ssub.s32 %s13, 2
      %s20 = sadd.s32 %s13, 1
      %s21 = ssub.s32 %s13, %s20
      %p22 = scmp.eq.s32.totalorder %s21, 0
      %s24 = sadd.s32 %s23, 1
      %s25 = scalar_select %p22, %s23, %s24
      %p28 = pneg %p22
      %p29 = scmp.eq.s32.totalorder %s13, 1
      %p30 = por %p28, %p29
      %p31 = scmp.ne.s32.totalorder %s23, %s26
      %p32 = scmp.eq.s32.totalorder %s13, 0
      %p33 = por %p31, %p32
      %p34 = scmp.ne.s32.totalorder %s23, %s26
      %p35 = scmp.eq.s32.totalorder %s18, 1
      %p36 = por %p34, %p35
      %p37 = scmp.ne.s32.totalorder %s26, %s27
      %p38 = scmp.eq.s32.totalorder %s18, 0
      %p39 = por %p37, %p38
      %p40 = scmp.ne.s32.totalorder %s26, %s27
      %p41 = scmp.eq.s32.totalorder %s19, 1
      %p42 = por %p40, %p41
      %p44 = scmp.ne.s32.totalorder %s27, %s43
      %p45 = scmp.eq.s32.totalorder %s19, 0
      %p46 = por %p44, %p45
      %s47 = ssub.s32 %s13, %s20
      %p48 = scmp.eq.s32.totalorder %s47, 0
      %s50 = sadd.s32 %s49, 1
      %s51 = scalar_select %p48, %s49, %s50
      %p54 = pneg %p48
      %p55 = scmp.eq.s32.totalorder %s13, 1
      %p56 = por %p54, %p55
      %p57 = scmp.ne.s32.totalorder %s49, %s52
      %p58 = scmp.eq.s32.totalorder %s13, 0
      %p59 = por %p57, %p58
      %p60 = scmp.ne.s32.totalorder %s49, %s52
      %p61 = scmp.eq.s32.totalorder %s18, 1
      %p62 = por %p60, %p61
      %p63 = scmp.ne.s32.totalorder %s52, %s53
      %p64 = scmp.eq.s32.totalorder %s18, 0
      %p65 = por %p63, %p64
      %p66 = scmp.ne.s32.totalorder %s52, %s53
      %p67 = scmp.eq.s32.totalorder %s19, 1
      %p68 = por %p66, %p67
      %p70 = scmp.ne.s32.totalorder %s53, %s69
      %p71 = scmp.eq.s32.totalorder %s19, 0
      %p72 = por %p70, %p71
      %p73 = scmp.le.s32.totalorder 1, %s13
      %p74 = scmp.lt.s32.totalorder %s13, 3
      %p75 = pnand %p73, %p74
      %p76 = pneg %p75
      // Predicated region
      $region9: #{_hardmap_impl.1} parent=5 // pred_check
        _
      $region10: #{_hardmap_impl.1} parent=5 // pred_check_branch
        %78 = sbr.rel (%p75) target = $region12
      $region11: #{_hardmap_impl.1} parent=5 // pred_region
        %s79 = ssub.s32 %s13, 1
      $region12: #{_hardmap_impl.1} parent=5 // pred_fallthru
        _
      %p80 = scmp.lt.s32.totalorder %s13, 2
      // Predicated region
      $region13: #{_hardmap_impl.1} parent=5 // pred_check
        %p81 = pneg %p80
      $region14: #{_hardmap_impl.1} parent=5 // pred_check_branch
        %83 = sbr.rel (%p81) target = $region16
      $region15: #{_hardmap_impl.1} parent=5 // pred_region
        // Predicated region
        $region17: #{_hardmap_impl.1} parent=15 // pred_check
          %p84 = pneg %p33
        $region18: #{_hardmap_impl.1} parent=15 // pred_check_branch
          %86 = sbr.rel (%p84) target = $region20
        $region19: #{_hardmap_impl.1} parent=15 // pred_region
          %s87 = sand.u32 %s23, 1
          %s88 = scalar_lea.sflag [#allocation4], %s87
          %s89 = sand.u32 %s23, 1
          %s90 = smul.addr %s89, 16
          %s91 = scalar_lea.vmem [#allocation3], %s90
          %s93 = ssub.s32 256, 256
          %94 = vsyncadd %s88, %s93
          %s95 = smul.addr %s13, 2
          %s96 = smul.addr %s95, 128
          %s97 = scalar_lea.hbm %s0, %s96
          %s98 = sshll.u32 %s91, 4
          %s99 = int_to_ptr.vmem [resolvable:$true] %s98
          %104 = dma.hbm_to_vmem [thread:$0]  %s97, 256, %s99, %s88, 128, 128, 8
        $region20: #{_hardmap_impl.1} parent=15 // pred_fallthru
          _
      $region16: #{_hardmap_impl.1} parent=5 // pred_fallthru
        _
      %p105 = scmp.le.s32.totalorder 1, %s13
      %p106 = scmp.lt.s32.totalorder %s13, 3
      %p107 = pnand %p105, %p106
      %p108 = pneg %p107
      // Predicated region
      $region21: #{_hardmap_impl.1} parent=5 // pred_check
        _
      $region22: #{_hardmap_impl.1} parent=5 // pred_check_branch
        %110 = sbr.rel (%p107) target = $region24
      $region23: #{_hardmap_impl.1} parent=5 // pred_region
        %s111 = ssub.s32 %s13, 1
        %s112 = sand.u32 %s26, 1
        %s113 = scalar_lea.sflag [#allocation4], %s112
        %s114 = sand.u32 %s26, 1
        %s115 = smul.addr %s114, 16
        %s116 = scalar_lea.vmem [#allocation3], %s115
        // Predicated region
        $region25: #{_hardmap_impl.1} parent=23 // pred_check
          %p117 = pneg %p39
        $region26: #{_hardmap_impl.1} parent=23 // pred_check_branch
          %119 = sbr.rel (%p117) target = $region28
        $region27: #{_hardmap_impl.1} parent=23 // pred_region
          %120 = dma.done %s113, 256
        $region28: #{_hardmap_impl.1} parent=23 // pred_fallthru
          _
        %s121 = sand.u32 %s26, 1
        %s122 = scalar_lea.sflag [#allocation4], %s121
        %s123 = sand.u32 %s26, 1
        %s124 = smul.addr %s123, 16
        %s125 = scalar_lea.vmem [#allocation3], %s124
        %p126 = pneg %p39
        %p127 = pneg %p36
        %p128 = pneg %p65
        %p129 = pneg %p62
        %s130 = sand.u32 %s52, 1
        %s131 = scalar_lea.sflag [#allocation5], %s130
        %s132 = sand.u32 %s52, 1
        %s133 = smul.addr %s132, 16
        %s134 = scalar_lea.vmem [#allocation6], %s133
        %135 = vst [vmem:[#allocation2] sm:$0xff] -1.0
        %136 = vst [vmem:[#allocation2 + $0x8] sm:$0xff] -1.0
        %137 = vst [vmem:[#allocation2 + $0x10] sm:$0xff] -1.0
        %v138 = vld [vmem:[%s116] sm:$0xff]
        %v139 = vld [vmem:[%s116 + $0x8] sm:$0xff]
        %vm140 = vcmask 130048
        %141 = vst.msk [vmem:[#allocation2] sm:$0xff] %vm140, %v138
        %142 = vst.msk [vmem:[#allocation2 + $0x8] sm:$0xff] %vm140, %v139
        %v143 = vld [vmem:[#allocation2] sm:$0xff]
        %v144 = vld [vmem:[#allocation2 + $0x8] sm:$0xff]
        %v145 = vld [vmem:[#allocation2 + $0x10] sm:$0xff]
        %vm146 = vcmp.eq.f32.partialorder %v143, 0.0
        %vm147 = vcmp.eq.f32.partialorder %v144, 0.0
        %vm148 = vcmp.eq.f32.partialorder %v145, 0.0
        %v149 = vrot.slane %v143, 7
        %v150 = vrot.slane %v144, 7
        %v151 = vrot.slane %v145, 7
        %v152 = vlaneseq
        %v153 = vshrl.u32 %v152, 7
        %vm154 = vcmp.lt.s32.totalorder %v153, 1
        %v155 = vsel %vm154, %v150, %v151
        %v156 = vsel %vm154, %v149, %v150
        %v157 = vsel %vm154, %v151, %v149
        %v158 = vrot.slane %v143, 1
        %v159 = vrot.slane %v144, 1
        %v160 = vrot.slane %v145, 1
        %vm161 = vcmp.lt.s32.totalorder %v153, 7
        %v162 = vsel %vm161, %v159, %v160
        %v163 = vsel %vm161, %v158, %v159
        %v164 = vsel %vm161, %v160, %v158
        %v165 = vmax.f32 %v157, %v163
        %v166 = vmax.f32 %v156, %v162
        %v167 = vmax.f32 %v155, %v164
        %v168 = vmax.f32 %v143, %v165
        %v169 = vmax.f32 %v144, %v166
        %v170 = vmax.f32 %v145, %v167
        %171 = vrot.lane.b32.xlu0 %v168, 1
        %v172 = vpop.permute.xlu0 %171
        %173 = vrot.lane.b32.xlu0 %v169, 1
        %v174 = vpop.permute.xlu0 %173
        %175 = vrot.lane.b32.xlu0 %v170, 1
        %v176 = vpop.permute.xlu0 %175
        %177 = vrot.lane.b32.xlu0 %v168, 127
        %v178 = vpop.permute.xlu0 %177
        %179 = vrot.lane.b32.xlu0 %v169, 127
        %v180 = vpop.permute.xlu0 %179
        %181 = vrot.lane.b32.xlu0 %v170, 127
        %v182 = vpop.permute.xlu0 %181
        %v183 = vmax.f32 %v172, %v178
        %v184 = vmax.f32 %v174, %v180
        %v185 = vmax.f32 %v176, %v182
        %v186 = vmax.f32 %v168, %v183
        %v187 = vmax.f32 %v169, %v184
        %v188 = vmax.f32 %v170, %v185
        %vm189 = vcmp.gt.f32.partialorder %v186, 0.0
        %vm190 = vcmp.gt.f32.partialorder %v187, 0.0
        %vm191 = vcmp.gt.f32.partialorder %v188, 0.0
        %vm192 = vmand %vm146, %vm189
        %vm193 = vmand %vm147, %vm190
        %vm194 = vmand %vm148, %vm191
        %v195 = vsel %vm192, 1.0, 0.0
        %v196 = vsel %vm193, 1.0, 0.0
        %v197 = vsel %vm194, 1.0, 0.0
        %v198 = vrot.slane %v195, 7
        %v199 = vrot.slane %v196, 7
        %v200 = vrot.slane %v197, 7
        %v201 = vsel %vm154, %v199, %v200
        %v202 = vsel %vm154, %v198, %v199
        %v203 = vsel %vm154, %v200, %v198
        %v204 = vrot.slane %v195, 1
        %v205 = vrot.slane %v196, 1
        %v206 = vrot.slane %v197, 1
        %v207 = vsel %vm161, %v205, %v206
        %v208 = vsel %vm161, %v204, %v205
        %v209 = vsel %vm161, %v206, %v204
        %v210 = vmax.f32 %v203, %v208
        %v211 = vmax.f32 %v202, %v207
        %v212 = vmax.f32 %v201, %v209
        %v213 = vmax.f32 %v195, %v210
        %v214 = vmax.f32 %v196, %v211
        %v215 = vmax.f32 %v197, %v212
        %216 = vrot.lane.b32.xlu0 %v213, 1
        %v217 = vpop.permute.xlu0 %216
        %218 = vrot.lane.b32.xlu0 %v214, 1
        %v219 = vpop.permute.xlu0 %218
        %220 = vrot.lane.b32.xlu0 %v215, 1
        %v221 = vpop.permute.xlu0 %220
        %222 = vrot.lane.b32.xlu0 %v213, 127
        %v223 = vpop.permute.xlu0 %222
        %224 = vrot.lane.b32.xlu0 %v214, 127
        %v225 = vpop.permute.xlu0 %224
        %226 = vrot.lane.b32.xlu0 %v215, 127
        %v227 = vpop.permute.xlu0 %226
        %v228 = vmax.f32 %v217, %v223
        %v229 = vmax.f32 %v219, %v225
        %v230 = vmax.f32 %v221, %v227
        %v231 = vmax.f32 %v213, %v228
        %v232 = vmax.f32 %v214, %v229
        %v233 = vmax.f32 %v215, %v230
        %vm234 = vcmp.gt.f32.partialorder %v231, 0.0
        %vm235 = vcmp.gt.f32.partialorder %v232, 0.0
        %vm236 = vcmp.gt.f32.partialorder %v233, 0.0
        %vm237 = vmand %vm146, %vm234
        %vm238 = vmand %vm147, %vm235
        %vm239 = vmand %vm148, %vm236
        %v240 = vsel %vm237, 0.5, %v143
        %v241 = vsel %vm238, 0.5, %v144
        %v242 = vsel %vm239, 0.5, %v145
        %vm243 = vmxor %vm237, 1
        %vm244 = vmxor %vm238, 1
        %vm245 = vmxor %vm239, 1
        %vm246 = vmand %vm146, %vm243
        %vm247 = vmand %vm147, %vm244
        %vm248 = vmand %vm148, %vm245
        %v249 = vrot.slane %v240, 7
        %v250 = vrot.slane %v241, 7
        %v251 = vrot.slane %v242, 7
        %v252 = vsel %vm154, %v250, %v251
        %v253 = vsel %vm154, %v249, %v250
        %v254 = vsel %vm154, %v251, %v249
        %v255 = vrot.slane %v240, 1
        %v256 = vrot.slane %v241, 1
        %v257 = vrot.slane %v242, 1
        %v258 = vsel %vm161, %v256, %v257
        %v259 = vsel %vm161, %v255, %v256
        %v260 = vsel %vm161, %v257, %v255
        %v261 = vmax.f32 %v254, %v259
        %v262 = vmax.f32 %v253, %v258
        %v263 = vmax.f32 %v252, %v260
        %v264 = vmax.f32 %v240, %v261
        %v265 = vmax.f32 %v241, %v262
        %v266 = vmax.f32 %v242, %v263
        %267 = vrot.lane.b32.xlu0 %v264, 1
        %v268 = vpop.permute.xlu0 %267
        %269 = vrot.lane.b32.xlu0 %v265, 1
        %v270 = vpop.permute.xlu0 %269
        %271 = vrot.lane.b32.xlu0 %v266, 1
        %v272 = vpop.permute.xlu0 %271
        %273 = vrot.lane.b32.xlu0 %v264, 127
        %v274 = vpop.permute.xlu0 %273
        %275 = vrot.lane.b32.xlu0 %v265, 127
        %v276 = vpop.permute.xlu0 %275
        %277 = vrot.lane.b32.xlu0 %v266, 127
        %v278 = vpop.permute.xlu0 %277
        %v279 = vmax.f32 %v268, %v274
        %v280 = vmax.f32 %v270, %v276
        %v281 = vmax.f32 %v272, %v278
        %v282 = vmax.f32 %v264, %v279
        %v283 = vmax.f32 %v265, %v280
        %v284 = vmax.f32 %v266, %v281
        %vm285 = vcmp.gt.f32.partialorder %v282, 0.0
        %vm286 = vcmp.gt.f32.partialorder %v283, 0.0
        %vm287 = vcmp.gt.f32.partialorder %v284, 0.0
        %vm288 = vmand %vm246, %vm285
        %vm289 = vmand %vm247, %vm286
        %vm290 = vmand %vm248, %vm287
        %v291 = vsel %vm288, 1.0, 0.0
        %v292 = vsel %vm289, 1.0, 0.0
        %v293 = vsel %vm290, 1.0, 0.0
        %v294 = vrot.slane %v291, 7
        %v295 = vrot.slane %v292, 7
        %v296 = vrot.slane %v293, 7
        %v297 = vsel %vm154, %v294, %v295
        %v298 = vsel %vm154, %v296, %v294
        %v299 = vrot.slane %v291, 1
        %v300 = vrot.slane %v292, 1
        %v301 = vrot.slane %v293, 1
        %v302 = vsel %vm161, %v300, %v301
        %v303 = vsel %vm161, %v299, %v300
        %v304 = vmax.f32 %v298, %v303
        %v305 = vmax.f32 %v297, %v302
        %v306 = vmax.f32 %v291, %v304
        %v307 = vmax.f32 %v292, %v305
        %308 = vrot.lane.b32.xlu0 %v306, 1
        %v309 = vpop.permute.xlu0 %308
        %310 = vrot.lane.b32.xlu0 %v307, 1
        %v311 = vpop.permute.xlu0 %310
        %312 = vrot.lane.b32.xlu0 %v306, 127
        %v313 = vpop.permute.xlu0 %312
        %314 = vrot.lane.b32.xlu0 %v307, 127
        %v315 = vpop.permute.xlu0 %314
        %v316 = vmax.f32 %v309, %v313
        %v317 = vmax.f32 %v311, %v315
        %v318 = vmax.f32 %v306, %v316
        %v319 = vmax.f32 %v307, %v317
        %vm320 = vcmp.gt.f32.partialorder %v318, 0.0
        %vm321 = vcmp.gt.f32.partialorder %v319, 0.0
        %vm322 = vmand %vm246, %vm320
        %vm323 = vmand %vm247, %vm321
        %v324 = vsel %vm322, 0.25, %v240
        %v325 = vsel %vm323, 0.25, %v241
        %326 = vst.msk [vmem:[%s134] sm:$0xff] %vm140, %v324
        %327 = vst.msk [vmem:[%s134 + $0x8] sm:$0xff] %vm140, %v325
        %s328 = sand.u32 %s52, 1
        %s329 = scalar_lea.sflag [#allocation5], %s328
        %s330 = sand.u32 %s52, 1
        %s331 = smul.addr %s330, 16
        %s332 = scalar_lea.vmem [#allocation6], %s331
        // Predicated region
        $region29: #{_hardmap_impl.1} parent=23 // pred_check
          %p333 = pneg %p62
        $region30: #{_hardmap_impl.1} parent=23 // pred_check_branch
          %335 = sbr.rel (%p333) target = $region32
        $region31: #{_hardmap_impl.1} parent=23 // pred_region
          %s337 = ssub.s32 256, 256
          %338 = vsyncadd %s329, %s337
          %s339 = smul.addr %s18, 2
          %s340 = smul.addr %s339, 128
          %s341 = scalar_lea.hbm %s1, %s340
          %s342 = sshll.u32 %s332, 4
          %s343 = int_to_ptr.vmem [resolvable:$true] %s342
          %348 = dma.vmem_to_hbm [thread:$0]  %s343, 256, %s341, %s329, 128, 128, 8
        $region32: #{_hardmap_impl.1} parent=23 // pred_fallthru
          _
      $region24: #{_hardmap_impl.1} parent=5 // pred_fallthru
        _
      %p349 = scmp.le.s32.totalorder 2, %s13
      // Predicated region
      $region33: #{_hardmap_impl.1} parent=5 // pred_check
        %p350 = pneg %p349
      $region34: #{_hardmap_impl.1} parent=5 // pred_check_branch
        %352 = sbr.rel (%p350) target = $region36
      $region35: #{_hardmap_impl.1} parent=5 // pred_region
        %s353 = ssub.s32 %s13, 2
        // Predicated region
        $region37: #{_hardmap_impl.1} parent=35 // pred_check
          %p354 = pneg %p68
        $region38: #{_hardmap_impl.1} parent=35 // pred_check_branch
          %356 = sbr.rel (%p354) target = $region40
        $region39: #{_hardmap_impl.1} parent=35 // pred_region
          %s357 = sand.u32 %s53, 1
          %s358 = scalar_lea.sflag [#allocation5], %s357
          %s359 = sand.u32 %s53, 1
          %s360 = smul.addr %s359, 16
          %s361 = scalar_lea.vmem [#allocation6], %s360
          %362 = dma.done %s358, 256
        $region40: #{_hardmap_impl.1} parent=35 // pred_fallthru
          _
      $region36: #{_hardmap_impl.1} parent=5 // pred_fallthru
        _
    $region6: #{_hardmap_impl.1} parent=1 // loop_footer
      %s17 = sadd.s32 1, %s13
    $region7: #{_hardmap_impl.1} parent=1 // loop_footer_branch
      %12 = sbr.rel target = $region3
    $region8: #{_hardmap_impl.1} parent=1 // loop_exit
      _
    %363 = vsyncpa [#allocation4], 1
    %s364 = scalar_lea.sflag [#allocation4], 1
    %365 = vsyncpa %s364, 1
    %366 = vsyncpa [#allocation5], 1
    %s367 = scalar_lea.sflag [#allocation5], 1
    %368 = vsyncpa %s367, 1

</llo_original>
